<compile_context>
chip_gen: v7x
topology: tpu7x:2x2x1
jax: 0.10.0
libtpu: 0.0.40
codegen_flags: <defaults>
</compile_context>

<pallas_src>
import functools

import jax
import jax.numpy as jnp
from jax.experimental import pallas as pl
from jax.experimental.pallas import tpu as pltpu


def _round_up(x, m):
    return ((x + m - 1) // m) * m


def _bprmf_kernel(uF_ref, tableT_ref, out_ref, *, tn, table_resident):
    # uF_ref:     (TB, D)        compute dtype (bf16) -- per-user features tile
    # tableT_ref: (D, TN)/(D,Np) compute dtype (bf16) -- (slice of) transposed table
    # out_ref:    (TB, TN)       f32                  -- scores tile
    if table_resident:
        # Whole transposed table is VMEM-resident; slice the current item tile.
        start = pl.multiple_of(pl.program_id(1) * tn, 128)
        tbl = tableT_ref[:, pl.ds(start, tn)]
    else:
        tbl = tableT_ref[...]
    # (TB, D) x (D, TN) on the MXU, f32 accumulation, lane-dense f32 store.
    out_ref[...] = jnp.dot(uF_ref[...], tbl,
                           preferred_element_type=jnp.float32)


@functools.partial(
    jax.jit,
    static_argnames=("tb", "tn", "compute_dtype", "resident_table_budget_bytes"))
def bprmf_forward(seq, lengths, item_table, *, tb=256, tn=1024,
                  compute_dtype=jnp.bfloat16,
                  resident_table_budget_bytes=8 * 1024 * 1024):
    """seq: (seq_len, batch) int32; lengths: (batch,) float; item_table:
    (n_items, dim) float32. Returns scores (batch, n_items) in f32."""
    n_items, dim = item_table.shape
    itemsize = jnp.dtype(compute_dtype).itemsize

    # ---- Wrapper glue (hoisted out of the kernel; XLA fuses gather+sum) ----
    item_seq_emb = jnp.take(item_table, seq.T, axis=0)            # (B, L, D) f32
    B = item_seq_emb.shape[0]
    uF = jnp.sum(item_seq_emb, axis=1) / lengths.astype(jnp.float32)[:, None]

    # ---- Tile sizes: sublane-aligned batch tiles, lane-dense item tiles ----
    TB = min(tb, _round_up(B, 8))
    TN = min(tn, _round_up(n_items, 128))
    Bp = _round_up(B, TB)
    Np = _round_up(n_items, TN)

    uF_c = uF.astype(compute_dtype)                               # (B, D)
    if Bp != B:
        uF_c = jnp.pad(uF_c, ((0, Bp - B), (0, 0)))

    # Pre-transposed table (D, N) in compute dtype; zero-pad the item axis.
    table_T = item_table.T.astype(compute_dtype)
    if Np != n_items:
        table_T = jnp.pad(table_T, ((0, 0), (0, Np - n_items)))

    # Keep the full table VMEM-resident (single DMA) when it is small enough.
    table_bytes = dim * Np * itemsize
    table_resident = table_bytes <= resident_table_budget_bytes

    grid = (Bp // TB, Np // TN)

    if table_resident:
        table_spec = pl.BlockSpec((dim, Np), lambda b, n: (0, 0))
    else:
        table_spec = pl.BlockSpec((dim, TN), lambda b, n: (0, n))

    # VMEM footprint: double-buffered uF tile + out tile, plus table
    # (resident once, or double-buffered (D, TN) tiles). Clamp under v7x's
    # 64 MiB physical VMEM with headroom for internal scratch.
    footprint = 2 * TB * dim * itemsize + 2 * TB * TN * 4
    footprint += table_bytes if table_resident else 2 * dim * TN * itemsize
    vmem_limit = int(min(max(2 * footprint, 32 * 1024 * 1024), 56 * 1024 * 1024))

    kern = functools.partial(_bprmf_kernel, tn=TN, table_resident=table_resident)

    out = pl.pallas_call(
        kern,
        out_shape=jax.ShapeDtypeStruct((Bp, Np), jnp.float32),
        grid_spec=pltpu.PrefetchScalarGridSpec(
            num_scalar_prefetch=0,
            grid=grid,
            in_specs=[
                pl.BlockSpec((TB, dim), lambda b, n: (b, 0)),
                table_spec,
            ],
            out_specs=pl.BlockSpec((TB, TN), lambda b, n: (b, n)),
        ),
        compiler_params=pltpu.CompilerParams(
            dimension_semantics=("parallel", "parallel"),
            vmem_limit_bytes=vmem_limit,
        ),
    )(uF_c, table_T)

    return out[:B, :n_items]


if __name__ == "__main__":
    # Small, deterministic setup consistent with the module.
    item_num = 127                 # -> n_items = 128
    n_items = item_num + 1
    n_factors = 32                 # params['item_embedding_dim']
    batch = 8
    seq_len = 8

    key = jax.random.PRNGKey(0)
    k_emb, k_seq, k_len = jax.random.split(key, 3)

    # nn.Embedding init: _init_weights applies normal_(0, 0.002) to the whole
    # table (overwriting the padding_idx=0 zero row), so init the full table.
    item_table = 0.002 * jax.random.normal(
        k_emb, (n_items, n_factors), dtype=jnp.float32)

    # seq given as (seq_len, batch), matching the PyTorch dataloader convention.
    seq = jax.random.randint(k_seq, (seq_len, batch), 1, n_items, dtype=jnp.int32)
    lengths = jax.random.randint(k_len, (batch,), 1, seq_len + 1).astype(jnp.float32)

    scores = bprmf_forward(seq, lengths, item_table)
    scores = jax.block_until_ready(scores)
    assert scores.shape == (batch, n_items)

    # References in plain JAX.
    emb = jnp.take(item_table, seq.T, axis=0)
    uF_ref = jnp.sum(emb, axis=1) / lengths[:, None]
    ref_f32 = uF_ref @ item_table.T
    # bf16-input / f32-accumulate reference (what the MXU computes):
    ref_bf16 = (uF_ref.astype(jnp.bfloat16).astype(jnp.float32)
                @ item_table.T.astype(jnp.bfloat16).astype(jnp.float32))

    assert jnp.allclose(scores, ref_bf16, atol=1e-6, rtol=1e-3)
    assert jnp.allclose(scores, ref_f32, atol=1e-5, rtol=2e-2)

    print("KERNEL_OK")
</pallas_src>

<mosaic_0001>
module attributes {stable_mosaic.version = 11 : i64} {
  func.func @_bprmf_kernel(%arg0: i32, %arg1: i32, %arg2: memref<8x32xbf16, #tpu.memory_space<vmem>>, %arg3: memref<32x128xbf16, #tpu.memory_space<vmem>>, %arg4: memref<8x128xf32, #tpu.memory_space<vmem>>) attributes {dimension_semantics = [#tpu.dimension_semantics<parallel>, #tpu.dimension_semantics<parallel>], iteration_bounds = array<i64: 1, 1>, scalar_prefetch = 0 : i64, scratch_operands = 0 : i64, tpu.core_type = #tpu.core_type<tc>, window_params = [{transform_indices = @transform_0, window_bounds = array<i64: 8, 32>}, {pipeline_mode = #tpu.pipeline_mode<synchronous>, transform_indices = @transform_1, window_bounds = array<i64: 32, 128>}, {transform_indices = @transform_2, window_bounds = array<i64: 8, 128>}]} {
    %c128_i32 = arith.constant 128 : i32
    %0 = arith.muli %arg1, %c128_i32 : i32
    %1 = tpu.assume_multiple %0, 128 : i32
    %c0 = arith.constant 0 : index
    %2 = arith.index_cast %1 : i32 to index
    %3 = vector.load %arg3[%c0, %2] : memref<32x128xbf16, #tpu.memory_space<vmem>>, vector<32x128xbf16>
    %c0_0 = arith.constant 0 : index
    %c0_1 = arith.constant 0 : index
    %4 = vector.load %arg2[%c0_0, %c0_1] : memref<8x32xbf16, #tpu.memory_space<vmem>>, vector<8x32xbf16>
    %cst = arith.constant dense<0.000000e+00> : vector<8x128xf32>
    %5 = tpu.matmul %4, %3, %cst {dimension_numbers = #tpu.dot_dimension_numbers<[1], [0], [0], [1], [0, 0, 1, 1], [], []>} : vector<8x32xbf16>, vector<32x128xbf16>, vector<8x128xf32> -> vector<8x128xf32>
    %c0_2 = arith.constant 0 : index
    %c0_3 = arith.constant 0 : index
    %6 = vector.load %arg4[%c0_2, %c0_3] : memref<8x128xf32, #tpu.memory_space<vmem>>, vector<8x128xf32>
    tpu.vector_store %arg4[%c0_2, %c0_3], %5 {strides = array<i32>} : memref<8x128xf32, #tpu.memory_space<vmem>>, vector<8x128xf32>,
    return
  }
  func.func @transform_0(%arg0: i32, %arg1: i32) -> (i32, i32) {
    %c0_i32 = arith.constant 0 : i32
    %c0_i32_0 = arith.constant 0 : i32
    return %arg0, %c0_i32 : i32, i32
  }
  func.func @transform_1(%arg0: i32, %arg1: i32) -> (i32, i32) {
    %c0_i32 = arith.constant 0 : i32
    %c0_i32_0 = arith.constant 0 : i32
    %c0_i32_1 = arith.constant 0 : i32
    return %c0_i32, %c0_i32_0 : i32, i32
  }
  func.func @transform_2(%arg0: i32, %arg1: i32) -> (i32, i32) {
    %c0_i32 = arith.constant 0 : i32
    return %arg0, %arg1 : i32, i32
  }
}

</mosaic_0001>

<llo_original>
// kernel: bprmf_forward.1
$region0: #{bprmf_forward.1}
  #allocation0 [shape = 'u32[]', space=smem, size = 0x4, offset = 0x4, fixed_abs, tag = 'smem constant byte address 0x4 - core index']
  #allocation1 [shape = 'u32[144,128]{1,0:T(1,128)}', space=vmem, size = 0x12000, scoped, tag = 'internal scratch']
  %s0 = inlined_call_operand.vmem [shape: bf16[8,32], index: 0, kind: input, shape index: {}]
  %s1 = inlined_call_operand.vmem [shape: bf16[32,128], index: 1, kind: input, shape index: {}]
  %s2 = inlined_call_operand.hbm [shape: f32[8,128], index: 2, kind: output, shape index: {}]
  %s3 = sld [smem:[#allocation0]]
  $region18: #{bprmf_forward.1} parent=0
    _
  %s5 = ssub.s32 1, %s3
  %s6 = scalar_select 0, %s5, %s3
  $region1: #{bprmf_forward.1} parent=0
    #allocation2 [shape = 'u8[4096]{0}', space=vmem, size = 0x1000, scoped, tag = 'output window, operand 0, single buffered']
    #allocation3 [shape = 's32[1]{0}', space=sflag, size = 0x4, scoped, tag = 'scoped memory for bprmf_forward.1']
    %7 = vsyncpa [#allocation3], 0
    // Predicated region
    $region2: #{bprmf_forward.1} parent=1 // pred_check
      _
    $region3: #{bprmf_forward.1} parent=1 // pred_check_branch
      %9 = sbr.rel (0) target = $region5
    $region4: #{bprmf_forward.1} parent=1 // pred_region
      _
    $region5: #{bprmf_forward.1} parent=1 // pred_fallthru
      _
    // Predicated region
    $region6: #{bprmf_forward.1} parent=1 // pred_check
      _
    $region7: #{bprmf_forward.1} parent=1 // pred_check_branch
      %11 = sbr.rel (0) target = $region9
    $region8: #{bprmf_forward.1} parent=1 // pred_region
      _
    $region9: #{bprmf_forward.1} parent=1 // pred_fallthru
      _
    %s13 = smul.u32 0, 128
    %s14 = sshra.s32 %s13, 7
    %s15 = sand.u32 %s13, 127
    %s16 = smul.addr %s14, 4
    %s17 = scalar_lea.vmem %s1, %s16
    %v18 = vld [vmem:[%s17] sm:$0xf]
    %v19 = vld [vmem:[%s17 + $0x4] sm:$0xf]
    %v20 = vld [vmem:[%s17 + $0x8] sm:$0xf]
    %v21 = vld [vmem:[%s17 + $0xc] sm:$0xf]
    %v22 = vld [vmem:[%s0] sm:$0xf]
    %v27 = vunpack.c.l.b16 %v18
    %v28 = vunpack.c.l.b16 %v19
    %v29 = vunpack.c.l.b16 %v20
    %v30 = vunpack.c.l.b16 %v21
    %v31 = vpack.c.b16 %v28, %v27
    %v32 = vpack.c.b16 %v30, %v29
    %vm35 = vcmask 261120
    %v37 = vsel %vm35, %v22, 0
    %39 = vmatprep.subr.bf16.mxu0 0
    %40 = vmatpush1.bf16.msra.mxu0 %v31
    %41 = vmatprep.subr.bf16.mxu0 0
    %42 = vmatpush1.bf16.msra.mxu0 %v32
    %43 = vmatprep.subr.bf16.mxu0 0
    %44 = vmatpush1.bf16.msra.mxu0 0
    %45 = vmatprep.subr.bf16.mxu0 0
    %46 = vmatpush1.bf16.msra.mxu0 0
    %47 = vmatprep.subr.bf16.mxu0 0
    %48 = vmatpush1.bf16.msra.mxu0 0
    %49 = vmatprep.subr.bf16.mxu0 0
    %50 = vmatpush1.bf16.msra.mxu0 0
    %51 = vmatprep.subr.bf16.mxu0 0
    %52 = vmatpush1.bf16.msra.mxu0 0
    %53 = vmatprep.subr.bf16.mxu0 0
    %54 = vmatpush1.bf16.msra.mxu0 0
    %55 = vmatprep.subr.bf16.mxu0 0
    %56 = vmatpush1.bf16.msra.mxu0 0
    %57 = vmatprep.subr.bf16.mxu0 0
    %58 = vmatpush1.bf16.msra.mxu0 0
    %59 = vmatprep.subr.bf16.mxu0 0
    %60 = vmatpush1.bf16.msra.mxu0 0
    %61 = vmatprep.subr.bf16.mxu0 0
    %62 = vmatpush1.bf16.msra.mxu0 0
    %63 = vmatprep.subr.bf16.mxu0 0
    %64 = vmatpush1.bf16.msra.mxu0 0
    %65 = vmatprep.subr.bf16.mxu0 0
    %66 = vmatpush1.bf16.msra.mxu0 0
    %67 = vmatprep.subr.bf16.mxu0 0
    %68 = vmatpush1.bf16.msra.mxu0 0
    %69 = vmatprep.subr.bf16.mxu0 0
    %70 = vmatpush1.bf16.msra.mxu0 0
    %71 = vmatprep.mubr.bf16.mxu0 0
    %72 = vmatmul.mubr.bf16.gmra.mrb[0].mxu0 %v37
    %v73 = vpop.f32.mrb[0].mxu0
    %v74 = vadd.f32 0.0, %v73
    %v75 = vpop.f32.mrb[0].mxu0
    %v76 = vpop.f32.mrb[0].mxu0
    %v77 = vpop.f32.mrb[0].mxu0
    %78 = vdwg.mxu0
    %79 = vst [vmem:[#allocation2] sm:$0xff] %v74
    // Predicated region
    $region10: #{bprmf_forward.1} parent=1 // pred_check
      _
    $region11: #{bprmf_forward.1} parent=1 // pred_check_branch
      %81 = sbr.rel (0) target = $region13
    $region12: #{bprmf_forward.1} parent=1 // pred_region
      %s83 = ssub.s32 128, 128
      %84 = vsyncadd [#allocation3], %s83
      %s86 = sshll.u32 [#allocation2], 4
      %s87 = int_to_ptr.vmem [resolvable:$true] %s86
      %89 = dma.vmem_to_hbm [thread:$0]  %s87, 128, %s2, [#allocation3]
    $region13: #{bprmf_forward.1} parent=1 // pred_fallthru
      _
    // Predicated region
    $region14: #{bprmf_forward.1} parent=1 // pred_check
      _
    $region15: #{bprmf_forward.1} parent=1 // pred_check_branch
      %91 = sbr.rel (0) target = $region17
    $region16: #{bprmf_forward.1} parent=1 // pred_region
      %92 = dma.done [#allocation3], 128
    $region17: #{bprmf_forward.1} parent=1 // pred_fallthru
      _
    %93 = vsyncpa [#allocation3], 1

</llo_original>
